<compile_context>
chip_gen: v6e
topology: v6e:2x2x1
jax: 0.10.0
libtpu: 0.0.40
codegen_flags: <defaults>
</compile_context>

<pallas_src>
import math

import jax
import jax.numpy as jnp
from jax import lax
from jax.experimental import pallas as pl
from jax.experimental.pallas import tpu as pltpu

ALPHA = 0.25
GAMMA = 2.0
EPS = 1e-7
LOG_EPS = math.log(EPS)            # clip(p, EPS, 1-EPS)  ==  clip(log p, ...)
LOG1M_EPS = math.log(1.0 - EPS)


def _round_up(x, m):
    return ((x + m - 1) // m) * m


def _focal_loss_kernel(loc_p_ref, loc_t_ref, cls_p_ref, cls_t_ref, out_ref):
    """One lane-major anchor tile -> one (8,128) partial-sum block.

    loc_p_ref / loc_t_ref : (4, T)  native dtype (cast to f32 in-kernel)
    cls_p_ref             : (C, T)  native dtype
    cls_t_ref             : (1, T)  int32 labels in [-1, C]
    out_ref               : (8, 128) f32;  row 0 lanes 0/1/2 hold
                            [smooth_l1_sum, focal_sum, num_pos], rest zero.
    """
    labels = cls_t_ref[...]                              # (1, T) int32
    pos_f = (labels > 0).astype(jnp.float32)             # positive anchors (1, T)

    # ---- SmoothL1 (beta=1, sum reduction) over positive anchors ----
    d = loc_p_ref[...].astype(jnp.float32) - loc_t_ref[...].astype(jnp.float32)
    ad = jnp.abs(d)
    sl1 = jnp.where(ad < 1.0, 0.5 * d * d, ad - 0.5)     # (4, T)
    loc_part = jnp.sum(sl1 * pos_f)                      # mask broadcast (1,T)->(4,T)

    # ---- Focal loss via log-sum-exp ----
    # Only rows with label >= 1 contribute (one-hot t is zero for labels <= 0,
    # and label == -1 rows are excluded by the original pos_neg mask), so the
    # per-row focal term is ALPHA * (1 - p_true)^2 * (-log p_true) * [label>0].
    x = cls_p_ref[...].astype(jnp.float32)               # (C, T)
    x_max = jnp.max(x, axis=0, keepdims=True)            # (1, T)
    ex = jnp.exp(x - x_max)                              # one exp per element
    lse = x_max + jnp.log(jnp.sum(ex, axis=0, keepdims=True))

    cls_idx = lax.broadcasted_iota(jnp.int32, x.shape, 0)       # class id per sublane
    t = (labels == (cls_idx + 1)).astype(jnp.float32)           # one-hot[:, 1:]
    x_true = jnp.sum(t * x, axis=0, keepdims=True)              # logit of true class
    logp = jnp.clip(x_true - lse, LOG_EPS, LOG1M_EPS)           # == clipping p
    p = jnp.exp(logp)
    q = 1.0 - p
    fl_row = ALPHA * q * q * (-logp)                            # GAMMA == 2 -> q*q
    cls_part = jnp.sum(fl_row * pos_f)

    np_part = jnp.sum(pos_f)

    # Pack the three per-tile scalars into a lane-dense (8,128) output block.
    row = lax.broadcasted_iota(jnp.int32, (8, 128), 0)
    lane = lax.broadcasted_iota(jnp.int32, (8, 128), 1)
    first = row == 0
    blk = jnp.where(first & (lane == 0), loc_part, 0.0)
    blk = blk + jnp.where(first & (lane == 1), cls_part, 0.0)
    blk = blk + jnp.where(first & (lane == 2), np_part, 0.0)
    out_ref[...] = blk


def focal_loss_forward(loc_preds, loc_targets, cls_preds, cls_targets,
                       num_classes, tile_n=2048, vmem_budget_bytes=8 << 20):
    """loss = SmoothL1(loc_preds, loc_targets)[pos] / num_pos
            + FocalLoss(cls_preds, cls_targets)[valid] / num_pos"""
    B, A, _ = loc_preds.shape
    C = num_classes
    N = B * A

    # Lane-major layout: anchors on the lane axis (layout plumbing only).
    # Inputs stay in their native dtype; casting happens per-tile in VMEM.
    loc_p = loc_preds.reshape(N, 4).T                    # (4, N)
    loc_t = loc_targets.reshape(N, 4).T                  # (4, N)
    cls_p = cls_preds.reshape(N, C).T                    # (C, N)
    cls_t = cls_targets.reshape(1, N).astype(jnp.int32)  # (1, N)

    # Tile sizing: large lane-dense tiles, capped so the double-buffered
    # working set fits comfortably under the smallest default scoped VMEM
    # (v5e ~16 MiB; v6e/v7x ~32 MiB) without raising vmem_limit_bytes.
    bytes_per_anchor = (2 * 4 * loc_p.dtype.itemsize     # loc preds + targets
                        + C * cls_p.dtype.itemsize       # class logits
                        + 4)                             # int32 label
    cap = max(128, (vmem_budget_bytes // (2 * bytes_per_anchor)) // 128 * 128)
    tile_n = max(128, (min(tile_n, cap) // 128) * 128)
    tile_n = min(tile_n, _round_up(N, 128))
    N_pad = _round_up(N, tile_n)

    if N_pad != N:
        pad = N_pad - N
        loc_p = jnp.pad(loc_p, ((0, 0), (0, pad)))
        loc_t = jnp.pad(loc_t, ((0, 0), (0, pad)))
        cls_p = jnp.pad(cls_p, ((0, 0), (0, pad)))
        # padded anchors get label -1 so every mask zeroes them out
        cls_t = jnp.pad(cls_t, ((0, 0), (0, pad)), constant_values=-1)

    num_tiles = N_pad // tile_n

    partials = pl.pallas_call(
        _focal_loss_kernel,
        out_shape=jax.ShapeDtypeStruct((num_tiles * 8, 128), jnp.float32),
        grid_spec=pltpu.PrefetchScalarGridSpec(
            num_scalar_prefetch=0,
            grid=(num_tiles,),
            in_specs=[
                pl.BlockSpec((4, tile_n), lambda i: (0, i)),
                pl.BlockSpec((4, tile_n), lambda i: (0, i)),
                pl.BlockSpec((C, tile_n), lambda i: (0, i)),
                pl.BlockSpec((1, tile_n), lambda i: (0, i)),
            ],
            out_specs=pl.BlockSpec((8, 128), lambda i: (i, 0)),
        ),
        compiler_params=pltpu.CompilerParams(
            dimension_semantics=("parallel",)),   # independent per-tile partials
    )(loc_p, loc_t, cls_p, cls_t)

    sums = jnp.sum(partials, axis=0)              # (128,)
    loc_loss, cls_loss, num_pos = sums[0], sums[1], sums[2]
    num_pos = jnp.maximum(1.0, num_pos)
    return (loc_loss + cls_loss) / num_pos


def focal_loss_reference(loc_preds, loc_targets, cls_preds, cls_targets,
                         num_classes):
    """Pure-JAX reference mirroring the PyTorch module."""
    pos = cls_targets > 0
    num_pos = jnp.sum(pos).astype(jnp.float32)

    d = loc_preds - loc_targets
    ad = jnp.abs(d)
    sl1 = jnp.where(ad < 1.0, 0.5 * d * d, ad - 0.5)
    loc_loss = jnp.sum(sl1 * pos[..., None])

    pos_neg = cls_targets > -1
    p = jax.nn.softmax(cls_preds, axis=-1)
    p = jnp.clip(p, EPS, 1.0 - EPS)
    t = jax.nn.one_hot(cls_targets, num_classes + 1)[..., 1:]
    fl = ALPHA * (-t * jnp.log(p)) * (1.0 - p) ** GAMMA
    cls_loss = jnp.sum(fl * pos_neg[..., None])

    num_pos = jnp.maximum(1.0, num_pos)
    return loc_loss / num_pos + cls_loss / num_pos


if __name__ == "__main__":
    key = jax.random.PRNGKey(0)
    B, A, C = 2, 16, 8   # batch, anchors per image, num_classes

    k1, k2, k3, k4 = jax.random.split(key, 4)
    loc_preds = jax.random.normal(k1, (B, A, 4), jnp.float32)
    loc_targets = jax.random.normal(k2, (B, A, 4), jnp.float32)
    cls_preds = jax.random.normal(k3, (B, A, C), jnp.float32)
    # labels in [-1, C]: -1 = ignored, 0 = background, 1..C = object classes
    cls_targets = jax.random.randint(k4, (B, A), -1, C + 1, dtype=jnp.int32)

    loss = focal_loss_forward(loc_preds, loc_targets, cls_preds, cls_targets, C)
    loss = jax.block_until_ready(loss)

    ref = focal_loss_reference(loc_preds, loc_targets, cls_preds, cls_targets, C)
    ref = jax.block_until_ready(ref)

    assert jnp.isfinite(loss), "kernel produced non-finite loss"
    assert abs(float(loss) - float(ref)) <= 1e-3 * max(1.0, abs(float(ref))), \
        f"mismatch: kernel={float(loss)} ref={float(ref)}"

    print("KERNEL_OK")
</pallas_src>

<mosaic_0001>
module attributes {stable_mosaic.version = 11 : i64} {
  func.func @_focal_loss_kernel(%arg0: i32, %arg1: memref<4x128xf32, #tpu.memory_space<vmem>>, %arg2: memref<4x128xf32, #tpu.memory_space<vmem>>, %arg3: memref<8x128xf32, #tpu.memory_space<vmem>>, %arg4: memref<1x128xi32, #tpu.memory_space<vmem>>, %arg5: memref<8x128xf32, #tpu.memory_space<vmem>>) attributes {dimension_semantics = [#tpu.dimension_semantics<parallel>], iteration_bounds = array<i64: 1>, scalar_prefetch = 0 : i64, scratch_operands = 0 : i64, tpu.core_type = #tpu.core_type<tc>, window_params = [{transform_indices = @transform_0, window_bounds = array<i64: 4, 128>}, {transform_indices = @transform_1, window_bounds = array<i64: 4, 128>}, {transform_indices = @transform_2, window_bounds = array<i64: 8, 128>}, {transform_indices = @transform_3, window_bounds = array<i64: 1, 128>}, {transform_indices = @transform_4, window_bounds = array<i64: 8, 128>}]} {
    %c0 = arith.constant 0 : index
    %c0_0 = arith.constant 0 : index
    %0 = vector.load %arg4[%c0, %c0_0] : memref<1x128xi32, #tpu.memory_space<vmem>>, vector<1x128xi32>
    %c0_i32 = arith.constant 0 : i32
    %1 = vector.broadcast %c0_i32 : i32 to vector<1x128xi32>
    %2 = arith.cmpi sgt, %0, %1 : vector<1x128xi32>
    %3 = arith.extui %2 : vector<1x128xi1> to vector<1x128xi32>
    %4 = arith.sitofp %3 : vector<1x128xi32> to vector<1x128xf32>
    %c0_1 = arith.constant 0 : index
    %c0_2 = arith.constant 0 : index
    %5 = vector.load %arg1[%c0_1, %c0_2] : memref<4x128xf32, #tpu.memory_space<vmem>>, vector<4x128xf32>
    %c0_3 = arith.constant 0 : index
    %c0_4 = arith.constant 0 : index
    %6 = vector.load %arg2[%c0_3, %c0_4] : memref<4x128xf32, #tpu.memory_space<vmem>>, vector<4x128xf32>
    %7 = arith.subf %5, %6 : vector<4x128xf32>
    %8 = math.absf %7 : vector<4x128xf32>
    %cst = arith.constant 1.000000e+00 : f32
    %9 = vector.broadcast %cst : f32 to vector<4x128xf32>
    %10 = arith.cmpf olt, %8, %9 : vector<4x128xf32>
    %cst_5 = arith.constant 5.000000e-01 : f32
    %11 = vector.broadcast %cst_5 : f32 to vector<4x128xf32>
    %12 = arith.mulf %11, %7 : vector<4x128xf32>
    %13 = arith.mulf %12, %7 : vector<4x128xf32>
    %cst_6 = arith.constant 5.000000e-01 : f32
    %14 = vector.broadcast %cst_6 : f32 to vector<4x128xf32>
    %15 = arith.subf %8, %14 : vector<4x128xf32>
    %16 = arith.select %10, %13, %15 : vector<4x128xi1>, vector<4x128xf32>
    %17 = vector.broadcast %4 : vector<1x128xf32> to vector<4x128xf32>
    %18 = arith.mulf %16, %17 : vector<4x128xf32>
    %19 = vector.shape_cast %18 : vector<4x128xf32> to vector<1x4x128xf32>
    %cst_7 = arith.constant dense<0.000000e+00> : vector<1xf32>
    %20 = vector.multi_reduction <add>, %19, %cst_7 [1, 2] : vector<1x4x128xf32> to vector<1xf32>
    %21 = vector.shape_cast %20 : vector<1xf32> to vector<1x1x1xf32>
    %22 = vector.extract %21[0, 0, 0] : f32 from vector<1x1x1xf32>
    %c0_8 = arith.constant 0 : index
    %c0_9 = arith.constant 0 : index
    %23 = vector.load %arg3[%c0_8, %c0_9] : memref<8x128xf32, #tpu.memory_space<vmem>>, vector<8x128xf32>
    %cst_10 = arith.constant dense<0xFF800000> : vector<128xf32>
    %24 = vector.multi_reduction <maximumf>, %23, %cst_10 [0] : vector<8x128xf32> to vector<128xf32>
    %25 = vector.shape_cast %24 : vector<128xf32> to vector<1x128xf32>
    %26 = vector.broadcast %25 : vector<1x128xf32> to vector<8x128xf32>
    %27 = arith.subf %23, %26 : vector<8x128xf32>
    %28 = math.exp %27 : vector<8x128xf32>
    %cst_11 = arith.constant dense<0.000000e+00> : vector<128xf32>
    %29 = vector.multi_reduction <add>, %28, %cst_11 [0] : vector<8x128xf32> to vector<128xf32>
    %30 = vector.shape_cast %29 : vector<128xf32> to vector<1x128xf32>
    %31 = math.log %30 : vector<1x128xf32>
    %32 = arith.addf %25, %31 : vector<1x128xf32>
    %33 = tpu.iota {dimensions = array<i32: 0>} : vector<8x128xi32>
    %c1_i32 = arith.constant 1 : i32
    %34 = vector.broadcast %c1_i32 : i32 to vector<8x128xi32>
    %35 = arith.addi %33, %34 : vector<8x128xi32>
    %36 = vector.broadcast %0 : vector<1x128xi32> to vector<8x128xi32>
    %37 = arith.cmpi eq, %36, %35 : vector<8x128xi32>
    %38 = arith.extui %37 : vector<8x128xi1> to vector<8x128xi32>
    %39 = arith.sitofp %38 : vector<8x128xi32> to vector<8x128xf32>
    %40 = arith.mulf %39, %23 : vector<8x128xf32>
    %cst_12 = arith.constant dense<0.000000e+00> : vector<128xf32>
    %41 = vector.multi_reduction <add>, %40, %cst_12 [0] : vector<8x128xf32> to vector<128xf32>
    %42 = vector.shape_cast %41 : vector<128xf32> to vector<1x128xf32>
    %43 = arith.subf %42, %32 : vector<1x128xf32>
    %cst_13 = arith.constant -16.1180954 : f32
    %cst_14 = arith.constant -1.00000008E-7 : f32
    %44 = vector.broadcast %cst_13 : f32 to vector<1x128xf32>
    %45 = arith.maximumf %44, %43 : vector<1x128xf32>
    %46 = vector.broadcast %cst_14 : f32 to vector<1x128xf32>
    %47 = arith.minimumf %46, %45 : vector<1x128xf32>
    %48 = math.exp %47 : vector<1x128xf32>
    %cst_15 = arith.constant 1.000000e+00 : f32
    %49 = vector.broadcast %cst_15 : f32 to vector<1x128xf32>
    %50 = arith.subf %49, %48 : vector<1x128xf32>
    %cst_16 = arith.constant 2.500000e-01 : f32
    %51 = vector.broadcast %cst_16 : f32 to vector<1x128xf32>
    %52 = arith.mulf %51, %50 : vector<1x128xf32>
    %53 = arith.mulf %52, %50 : vector<1x128xf32>
    %cst_17 = arith.constant 0.000000e+00 : f32
    %54 = vector.broadcast %cst_17 : f32 to vector<1x128xf32>
    %55 = arith.subf %54, %47 : vector<1x128xf32>
    %56 = arith.mulf %53, %55 : vector<1x128xf32>
    %57 = arith.mulf %56, %4 : vector<1x128xf32>
    %58 = vector.shape_cast %57 : vector<1x128xf32> to vector<1x1x128xf32>
    %cst_18 = arith.constant dense<0.000000e+00> : vector<1xf32>
    %59 = vector.multi_reduction <add>, %58, %cst_18 [1, 2] : vector<1x1x128xf32> to vector<1xf32>
    %60 = vector.shape_cast %59 : vector<1xf32> to vector<1x1x1xf32>
    %61 = vector.extract %60[0, 0, 0] : f32 from vector<1x1x1xf32>
    %62 = vector.shape_cast %4 : vector<1x128xf32> to vector<1x1x128xf32>
    %cst_19 = arith.constant dense<0.000000e+00> : vector<1xf32>
    %63 = vector.multi_reduction <add>, %62, %cst_19 [1, 2] : vector<1x1x128xf32> to vector<1xf32>
    %64 = vector.shape_cast %63 : vector<1xf32> to vector<1x1x1xf32>
    %65 = vector.extract %64[0, 0, 0] : f32 from vector<1x1x1xf32>
    %66 = tpu.iota {dimensions = array<i32: 0>} : vector<8x128xi32>
    %67 = tpu.iota {dimensions = array<i32: 1>} : vector<8x128xi32>
    %c0_i32_20 = arith.constant 0 : i32
    %68 = vector.broadcast %c0_i32_20 : i32 to vector<8x128xi32>
    %69 = arith.cmpi eq, %66, %68 : vector<8x128xi32>
    %c0_i32_21 = arith.constant 0 : i32
    %70 = vector.broadcast %c0_i32_21 : i32 to vector<8x128xi32>
    %71 = arith.cmpi eq, %67, %70 : vector<8x128xi32>
    %72 = arith.andi %69, %71 : vector<8x128xi1>
    %cst_22 = arith.constant 0.000000e+00 : f32
    %73 = vector.broadcast %22 : f32 to vector<8x128xf32>
    %74 = vector.broadcast %cst_22 : f32 to vector<8x128xf32>
    %75 = arith.select %72, %73, %74 : vector<8x128xi1>, vector<8x128xf32>
    %c1_i32_23 = arith.constant 1 : i32
    %76 = vector.broadcast %c1_i32_23 : i32 to vector<8x128xi32>
    %77 = arith.cmpi eq, %67, %76 : vector<8x128xi32>
    %78 = arith.andi %69, %77 : vector<8x128xi1>
    %cst_24 = arith.constant 0.000000e+00 : f32
    %79 = vector.broadcast %61 : f32 to vector<8x128xf32>
    %80 = vector.broadcast %cst_24 : f32 to vector<8x128xf32>
    %81 = arith.select %78, %79, %80 : vector<8x128xi1>, vector<8x128xf32>
    %82 = arith.addf %75, %81 : vector<8x128xf32>
    %c2_i32 = arith.constant 2 : i32
    %83 = vector.broadcast %c2_i32 : i32 to vector<8x128xi32>
    %84 = arith.cmpi eq, %67, %83 : vector<8x128xi32>
    %85 = arith.andi %69, %84 : vector<8x128xi1>
    %cst_25 = arith.constant 0.000000e+00 : f32
    %86 = vector.broadcast %65 : f32 to vector<8x128xf32>
    %87 = vector.broadcast %cst_25 : f32 to vector<8x128xf32>
    %88 = arith.select %85, %86, %87 : vector<8x128xi1>, vector<8x128xf32>
    %89 = arith.addf %82, %88 : vector<8x128xf32>
    %c0_26 = arith.constant 0 : index
    %c0_27 = arith.constant 0 : index
    %90 = vector.load %arg5[%c0_26, %c0_27] : memref<8x128xf32, #tpu.memory_space<vmem>>, vector<8x128xf32>
    tpu.vector_store %arg5[%c0_26, %c0_27], %89 {strides = array<i32>} : memref<8x128xf32, #tpu.memory_space<vmem>>, vector<8x128xf32>,
    return
  }
  func.func @transform_0(%arg0: i32) -> (i32, i32) {
    %c0_i32 = arith.constant 0 : i32
    %c0_i32_0 = arith.constant 0 : i32
    return %c0_i32, %arg0 : i32, i32
  }
  func.func @transform_1(%arg0: i32) -> (i32, i32) {
    %c0_i32 = arith.constant 0 : i32
    %c0_i32_0 = arith.constant 0 : i32
    return %c0_i32, %arg0 : i32, i32
  }
  func.func @transform_2(%arg0: i32) -> (i32, i32) {
    %c0_i32 = arith.constant 0 : i32
    %c0_i32_0 = arith.constant 0 : i32
    return %c0_i32, %arg0 : i32, i32
  }
  func.func @transform_3(%arg0: i32) -> (i32, i32) {
    %c0_i32 = arith.constant 0 : i32
    %c0_i32_0 = arith.constant 0 : i32
    return %c0_i32, %arg0 : i32, i32
  }
  func.func @transform_4(%arg0: i32) -> (i32, i32) {
    %c0_i32 = arith.constant 0 : i32
    %c0_i32_0 = arith.constant 0 : i32
    return %arg0, %c0_i32 : i32, i32
  }
}

</mosaic_0001>

<llo_original>
// kernel: tpu_custom_call.1
$region0: #{tpu_custom_call.1}
  #allocation0 [shape = 'u32[]', space=smem, size = 0x4, offset = 0x4, fixed_abs, tag = 'smem constant byte address 0x4 - core index']
  #allocation1 [shape = 'u32[144,128]{1,0:T(1,128)}', space=vmem, size = 0x12000, scoped, tag = 'internal scratch']
  %s0 = inlined_call_operand.hbm [shape: f32[4,128], index: 0, kind: input, shape index: {}]
  %s1 = inlined_call_operand.hbm [shape: f32[4,128], index: 1, kind: input, shape index: {}]
  %s2 = inlined_call_operand.hbm [shape: f32[8,128], index: 2, kind: input, shape index: {}]
  %s3 = inlined_call_operand.vmem [shape: s32[1,128], index: 3, kind: input, shape index: {}]
  %s4 = inlined_call_operand.hbm [shape: f32[8,128], index: 4, kind: output, shape index: {}]
  %s5 = sld [smem:[#allocation0]]
  $region38: #{tpu_custom_call.1} parent=0
    _
  %s7 = ssub.s32 1, %s5
  %s8 = scalar_select 0, %s7, %s5
  $region1: #{tpu_custom_call.1} parent=0
    #allocation2 [shape = 'u8[2048]{0}', space=vmem, size = 0x800, scoped, tag = 'input window, operand 0, single buffered']
    #allocation3 [shape = 's32[1]{0}', space=sflag, size = 0x4, scoped, tag = 'scoped memory for tpu_custom_call.1']
    #allocation4 [shape = 's32[1]{0}', space=sflag, size = 0x4, scoped, tag = 'scoped memory for tpu_custom_call.1']
    #allocation5 [shape = 'u8[2048]{0}', space=vmem, size = 0x800, scoped, tag = 'input window, operand 1, single buffered']
    #allocation6 [shape = 's32[1]{0}', space=sflag, size = 0x4, scoped, tag = 'scoped memory for tpu_custom_call.1']
    #allocation7 [shape = 'u8[4096]{0}', space=vmem, size = 0x1000, scoped, tag = 'input window, operand 2, single buffered']
    #allocation8 [shape = 'u8[4096]{0}', space=vmem, size = 0x1000, scoped, tag = 'output window, operand 0, single buffered']
    %9 = vsyncpa [#allocation3], 0
    %10 = vsyncpa [#allocation6], 0
    %11 = vsyncpa [#allocation4], 0
    // Predicated region
    $region2: #{tpu_custom_call.1} parent=1 // pred_check
      _
    $region3: #{tpu_custom_call.1} parent=1 // pred_check_branch
      %13 = sbr.rel (0) target = $region5
    $region4: #{tpu_custom_call.1} parent=1 // pred_region
      %s15 = ssub.s32 64, 64
      %16 = vsyncadd [#allocation3], %s15
      %s18 = sshll.u32 [#allocation2], 4
      %s19 = int_to_ptr.vmem [resolvable:$true] %s18
      %21 = dma.hbm_to_vmem [thread:$0]  %s0, 64, %s19, [#allocation3]
    $region5: #{tpu_custom_call.1} parent=1 // pred_fallthru
      _
    // Predicated region
    $region6: #{tpu_custom_call.1} parent=1 // pred_check
      _
    $region7: #{tpu_custom_call.1} parent=1 // pred_check_branch
      %23 = sbr.rel (0) target = $region9
    $region8: #{tpu_custom_call.1} parent=1 // pred_region
      %s25 = ssub.s32 64, 64
      %26 = vsyncadd [#allocation6], %s25
      %s28 = sshll.u32 [#allocation5], 4
      %s29 = int_to_ptr.vmem [resolvable:$true] %s28
      %31 = dma.hbm_to_vmem [thread:$0]  %s1, 64, %s29, [#allocation6]
    $region9: #{tpu_custom_call.1} parent=1 // pred_fallthru
      _
    // Predicated region
    $region10: #{tpu_custom_call.1} parent=1 // pred_check
      _
    $region11: #{tpu_custom_call.1} parent=1 // pred_check_branch
      %33 = sbr.rel (0) target = $region13
    $region12: #{tpu_custom_call.1} parent=1 // pred_region
      %s35 = ssub.s32 128, 128
      %36 = vsyncadd [#allocation6], %s35
      %s38 = sshll.u32 [#allocation7], 4
      %s39 = int_to_ptr.vmem [resolvable:$true] %s38
      %41 = dma.hbm_to_vmem [thread:$0]  %s2, 128, %s39, [#allocation6]
    $region13: #{tpu_custom_call.1} parent=1 // pred_fallthru
      _
    // Predicated region
    $region14: #{tpu_custom_call.1} parent=1 // pred_check
      _
    $region15: #{tpu_custom_call.1} parent=1 // pred_check_branch
      %43 = sbr.rel (0) target = $region17
    $region16: #{tpu_custom_call.1} parent=1 // pred_region
      _
    $region17: #{tpu_custom_call.1} parent=1 // pred_fallthru
      _
    // Predicated region
    $region18: #{tpu_custom_call.1} parent=1 // pred_check
      _
    $region19: #{tpu_custom_call.1} parent=1 // pred_check_branch
      %45 = sbr.rel (0) target = $region21
    $region20: #{tpu_custom_call.1} parent=1 // pred_region
      %46 = dma.done [#allocation3], 64
    $region21: #{tpu_custom_call.1} parent=1 // pred_fallthru
      _
    // Predicated region
    $region22: #{tpu_custom_call.1} parent=1 // pred_check
      _
    $region23: #{tpu_custom_call.1} parent=1 // pred_check_branch
      %48 = sbr.rel (0) target = $region25
    $region24: #{tpu_custom_call.1} parent=1 // pred_region
      %49 = dma.done [#allocation6], 64
    $region25: #{tpu_custom_call.1} parent=1 // pred_fallthru
      _
    // Predicated region
    $region26: #{tpu_custom_call.1} parent=1 // pred_check
      _
    $region27: #{tpu_custom_call.1} parent=1 // pred_check_branch
      %51 = sbr.rel (0) target = $region29
    $region28: #{tpu_custom_call.1} parent=1 // pred_region
      %52 = dma.done [#allocation6], 128
    $region29: #{tpu_custom_call.1} parent=1 // pred_fallthru
      _
    %v53 = vld [vmem:[%s3] sm:$0x1]
    %vm54 = vcmp.gt.s32.totalorder %v53, 0
    %v55 = vsel %vm54, 1, 0
    %v56 = vcvt.s32.f32 %v55
    %v57 = vld [vmem:[#allocation2] sm:$0xf]
    %v58 = vld [vmem:[#allocation5] sm:$0xf]
    %v59 = vsub.f32 %v57, %v58
    %v60 = vand.u32 2147483647, %v59
    %vm61 = vcmp.lt.f32.partialorder %v60, 1.0
    %v62 = vmul.f32 %v59, 0.5
    %v63 = vmul.f32 %v62, %v59
    %v64 = vsub.f32 %v60, 0.5
    %v65 = vsel %vm61, %v63, %v64
    %v67 = vlaneseq
    %v68 = vshrl.u32 %v67, 7
    %v69 = vsub.s32 0, %v68
    %v70 = vrot.slane %v56, %v69
    %v72 = vmul.f32 %v65, %v70
    %vm73 = vcmask 1043456
    %v74 = vsel %vm73, %v72, 0.0
    %75 = vadd.xlane.f32.xlu0 %v74
    %v76 = vpop.xlane.xlu0 %75
    %v77 = vrot.slane %v76, 4
    %v78 = vadd.f32 %v76, %v77
    %v79 = vrot.slane %v78, 2
    %v80 = vadd.f32 %v78, %v79
    %v81 = vrot.slane %v80, 1
    %v82 = vadd.f32 %v80, %v81
    %s83 = vtos %v82
    %v84 = vld [vmem:[#allocation7] sm:$0xff]
    %v85 = vrot.slane %v84, 4
    %v86 = vmax.f32 %v84, %v85
    %v87 = vrot.slane %v86, 2
    %v88 = vmax.f32 %v86, %v87
    %v89 = vrot.slane %v88, 1
    %v90 = vmax.f32 %v88, %v89
    %v91 = vsub.f32 %v84, %v90
    %v92 = vmul.f32 %v91, 1.442695
    %v93 = vpow.pop %v92
    %v94 = vrot.slane %v93, 4
    %v95 = vadd.f32 %v93, %v94
    %v96 = vrot.slane %v95, 2
    %v97 = vadd.f32 %v95, %v96
    %v98 = vrot.slane %v97, 1
    %v99 = vadd.f32 %v97, %v98
    %v100 = vlog2.pop %v99
    %v101 = vmul.f32 %v100, 0.6931472
    %v102 = vadd.f32 %v90, %v101
    %v103 = vlaneseq
    %v104 = vshrl.u32 %v103, 7
    %v105 = vadd.s32 %v104, 1
    %v106 = vlaneseq
    %v107 = vshrl.u32 %v106, 7
    %v108 = vsub.s32 0, %v107
    %v109 = vrot.slane %v53, %v108
    %vm110 = vcmp.eq.s32.totalorder %v109, %v105
    %v111 = vsel %vm110, 1, 0
    %v112 = vcvt.s32.f32 %v111
    %v113 = vmul.f32 %v112, %v84
    %v114 = vrot.slane %v113, 4
    %v115 = vadd.f32 %v113, %v114
    %v116 = vrot.slane %v115, 2
    %v117 = vadd.f32 %v115, %v116
    %v118 = vrot.slane %v117, 1
    %v119 = vadd.f32 %v117, %v118
    %v120 = vsub.f32 %v119, %v102
    %v121 = vmax.f32 %v120, -16.118095
    %v122 = vmin.f32 %v121, -1.0000001e-07
    %v123 = vmul.f32 %v122, 1.442695
    %v124 = vpow.pop %v123
    %v125 = vsub.f32 1.0, %v124
    %v126 = vmul.f32 %v125, 0.25
    %v127 = vmul.f32 %v126, %v125
    %v128 = vsub.f32 0.0, %v122
    %v129 = vmul.f32 %v127, %v128
    %v130 = vmul.f32 %v129, %v56
    %vm131 = vcmask 1040384
    %v132 = vsel %vm131, %v130, 0.0
    %133 = vadd.xlane.f32.xlu0 %v132
    %v134 = vpop.xlane.xlu0 %133
    %v135 = vrot.slane %v134, 4
    %v136 = vadd.f32 %v134, %v135
    %v137 = vrot.slane %v136, 2
    %v138 = vadd.f32 %v136, %v137
    %v139 = vrot.slane %v138, 1
    %v140 = vadd.f32 %v138, %v139
    %s141 = vtos %v140
    %v142 = vsel %vm131, %v56, 0.0
    %143 = vadd.xlane.f32.xlu0 %v142
    %v144 = vpop.xlane.xlu0 %143
    %v145 = vrot.slane %v144, 4
    %v146 = vadd.f32 %v144, %v145
    %v147 = vrot.slane %v146, 2
    %v148 = vadd.f32 %v146, %v147
    %v149 = vrot.slane %v148, 1
    %v150 = vadd.f32 %v148, %v149
    %s151 = vtos %v150
    %v152 = vlaneseq
    %v153 = vand.u32 %v152, 127
    %vm154 = vcmp.eq.s32.totalorder %v104, 0
    %vm155 = vcmp.eq.s32.totalorder %v153, 0
    %vm156 = vmand %vm154, %vm155
    %v157 = vstv %s83
    %v158 = vsel %vm156, %v157, 0.0
    %vm159 = vcmp.eq.s32.totalorder %v153, 1
    %vm160 = vmand %vm154, %vm159
    %v161 = vstv %s141
    %v162 = vsel %vm160, %v161, 0.0
    %v163 = vadd.f32 %v158, %v162
    %vm164 = vcmp.eq.s32.totalorder %v153, 2
    %vm165 = vmand %vm154, %vm164
    %v166 = vstv %s151
    %v167 = vsel %vm165, %v166, 0.0
    %v168 = vadd.f32 %v163, %v167
    %169 = vst [vmem:[#allocation8] sm:$0xff] %v168
    // Predicated region
    $region30: #{tpu_custom_call.1} parent=1 // pred_check
      _
    $region31: #{tpu_custom_call.1} parent=1 // pred_check_branch
      %171 = sbr.rel (0) target = $region33
    $region32: #{tpu_custom_call.1} parent=1 // pred_region
      %s173 = ssub.s32 128, 128
      %174 = vsyncadd [#allocation4], %s173
      %s176 = sshll.u32 [#allocation8], 4
      %s177 = int_to_ptr.vmem [resolvable:$true] %s176
      %179 = dma.vmem_to_hbm [thread:$0]  %s177, 128, %s4, [#allocation4]
    $region33: #{tpu_custom_call.1} parent=1 // pred_fallthru
      _
    // Predicated region
    $region34: #{tpu_custom_call.1} parent=1 // pred_check
      _
    $region35: #{tpu_custom_call.1} parent=1 // pred_check_branch
      %181 = sbr.rel (0) target = $region37
    $region36: #{tpu_custom_call.1} parent=1 // pred_region
      %182 = dma.done [#allocation4], 128
    $region37: #{tpu_custom_call.1} parent=1 // pred_fallthru
      _
    %183 = vsyncpa [#allocation3], 1
    %184 = vsyncpa [#allocation6], 1
    %185 = vsyncpa [#allocation4], 1

</llo_original>
